<compile_context>
chip_gen: v5e
topology: v5e:2x2
jax: 0.10.0
libtpu: 0.0.40
codegen_flags: <defaults>
</compile_context>

<pallas_src>
import functools

import jax
import jax.numpy as jnp
from jax import lax
from jax.experimental import pallas as pl
from jax.experimental.pallas import tpu as pltpu

_LANES = 128
_DEFAULT_MAX_BLOCK_ROWS = 4096   # DMA block height (rows of 128 lanes)
_DEFAULT_CHUNK_ROWS = 512        # in-kernel compute granularity


def _cdiv(a, b):
    return -(-a // b)


def _round_up(a, b):
    return _cdiv(a, b) * b


def _sublane_multiple(dtype):
    # Native TPU tiling: (8,128) for 4-byte, (16,128) for 2-byte dtypes.
    itemsize = jnp.dtype(dtype).itemsize
    return {4: 8, 2: 16, 1: 32}.get(itemsize, 8)


def _dice_bce_kernel(x_ref, t_ref, o_ref, *, block_rows, chunk_rows,
                     num_blocks, total_n, has_tail):
    step = pl.program_id(0)
    n_chunks = block_rows // chunk_rows
    last = num_blocks - 1

    @pl.when(step == 0)
    def _init():
        o_ref[...] = jnp.zeros_like(o_ref)

    def fold(v):
        # (chunk_rows, 128) -> (8, 128): vreg-group tree add; pure VPU adds,
        # no cross-lane (XLU) reduction in the hot loop.
        return jnp.sum(v.reshape(chunk_rows // 8, 8, _LANES), axis=0)

    def load(c):
        if n_chunks == 1:
            return (x_ref[...].astype(jnp.float32),
                    t_ref[...].astype(jnp.float32))
        r0 = pl.multiple_of(c * chunk_rows, chunk_rows)
        return (x_ref[pl.ds(r0, chunk_rows), :].astype(jnp.float32),
                t_ref[pl.ds(r0, chunk_rows), :].astype(jnp.float32))

    def accumulate(x, t, vf=None):
        # softplus(x) = max(x,0) + log1p(exp(-|x|)) drives both:
        #   p   = sigmoid(x) = exp(x - softplus(x))      (divide-free)
        #   bce = softplus(x) - t*x                      (BCE from logits)
        # -> 3 EUP ops and ~12 VPU ops per element (incl. the 4 fold adds).
        e = jnp.exp(-jnp.abs(x))
        sp = jnp.maximum(x, 0.0) + jnp.log1p(e)
        p = jnp.exp(x - sp)
        bce = sp - t * x
        if vf is not None:        # tail block only: zero padded/OOB elements
            p = p * vf
            t = t * vf
            bce = bce * vf
        o_ref[0] += fold(p * t)   # intersection  sum(p*t)
        o_ref[1] += fold(p)       # sum(p)
        o_ref[2] += fold(t)       # sum(t)
        o_ref[3] += fold(bce)     # sum of per-element BCE

    def fast_chunk(c):
        x, t = load(c)
        accumulate(x, t)

    def run_chunks(chunk_fn):
        if n_chunks == 1:
            chunk_fn(0)
        else:
            def body(c, carry):
                chunk_fn(c)
                return carry
            lax.fori_loop(0, n_chunks, body, 0)

    if not has_tail:
        run_chunks(fast_chunk)
    else:
        @pl.when(step != last)
        def _fast_blocks():
            run_chunks(fast_chunk)

        @pl.when(step == last)
        def _tail_block():
            # Number of real (unpadded, in-bounds) elements in this block.
            base = total_n - last * block_rows * _LANES   # static python int
            row_i = lax.broadcasted_iota(jnp.int32, (chunk_rows, _LANES), 0)
            lane_i = lax.broadcasted_iota(jnp.int32, (chunk_rows, _LANES), 1)
            elem_i = row_i * _LANES + lane_i

            def tail_chunk(c):
                x, t = load(c)
                limit = base - c * (chunk_rows * _LANES)
                valid = elem_i < limit
                # Sanitize before any math so OOB garbage can't produce NaNs.
                x = jnp.where(valid, x, 0.0)
                t = jnp.where(valid, t, 0.0)
                accumulate(x, t, valid.astype(jnp.float32))

            run_chunks(tail_chunk)


def dice_bce_loss(inputs, targets, smooth=1.0, *,
                  max_block_rows=_DEFAULT_MAX_BLOCK_ROWS,
                  chunk_rows=_DEFAULT_CHUNK_ROWS):
    """Matches DiceBCELoss.forward(inputs, targets, smooth); inputs are logits."""
    x = jnp.reshape(inputs, (-1,))
    t = jnp.reshape(targets, (-1,))
    # Stream f32 / bf16 / f16 at native width (halves HBM traffic for bf16);
    # anything else is cast to f32 up front.
    if x.dtype not in (jnp.float32, jnp.bfloat16, jnp.float16):
        x = x.astype(jnp.float32)
    if t.dtype not in (jnp.float32, jnp.bfloat16, jnp.float16):
        t = t.astype(jnp.float32)
    n = x.shape[0]

    # dtype-aware sublane rounding: (8,128) f32 tiles, (16,128) bf16/f16.
    row_mult = max(_sublane_multiple(x.dtype), _sublane_multiple(t.dtype))

    # Pad with zeros only when n is not already tile-aligned; padded zeros
    # (and any OOB tail rows) are masked exactly in the kernel's tail block.
    padded = max(_round_up(n, row_mult * _LANES), row_mult * _LANES)
    if padded != n:
        x = jnp.pad(x, (0, padded - n))
        t = jnp.pad(t, (0, padded - n))
    rows = padded // _LANES
    x2 = x.reshape(rows, _LANES)
    t2 = t.reshape(rows, _LANES)

    # DMA block: biggest tile-aligned block up to max_block_rows.
    block_cap = max(row_mult, (max_block_rows // row_mult) * row_mult)
    block_rows = min(block_cap, rows)
    num_blocks = _cdiv(rows, block_rows)

    # Compute chunk: bounds live vregs inside a block; must divide block_rows.
    chunk = max(8, (chunk_rows // 8) * 8)
    if block_rows % chunk != 0:
        chunk = block_rows

    covered = num_blocks * block_rows * _LANES
    has_tail = covered != n      # last block has padded / OOB elements to mask

    kernel = functools.partial(
        _dice_bce_kernel, block_rows=block_rows, chunk_rows=chunk,
        num_blocks=num_blocks, total_n=n, has_tail=has_tail)

    in_spec = pl.BlockSpec((block_rows, _LANES), lambda i: (i, 0))
    out_spec = pl.BlockSpec((4, 8, _LANES), lambda i: (0, 0, 0))

    partials = pl.pallas_call(
        kernel,
        out_shape=jax.ShapeDtypeStruct((4, 8, _LANES), jnp.float32),
        grid_spec=pltpu.PrefetchScalarGridSpec(
            num_scalar_prefetch=0,
            grid=(num_blocks,),
            in_specs=[in_spec, in_spec],
            out_specs=out_spec,
        ),
        compiler_params=pltpu.CompilerParams(
            dimension_semantics=("arbitrary",),
            vmem_limit_bytes=32 * 1024 * 1024),
    )(x2, t2)

    # Tiny XLA epilogue: one cross-lane reduction + scalar combine.
    sums = jnp.sum(partials, axis=(1, 2))
    inter, p_sum, t_sum, bce_sum = sums[0], sums[1], sums[2], sums[3]
    smooth = jnp.float32(smooth)
    dice_loss = 1.0 - (2.0 * inter + smooth) / (p_sum + t_sum + smooth)
    bce = bce_sum / jnp.float32(n)
    return bce + dice_loss


def _reference(inputs, targets, smooth=1.0):
    p = jax.nn.sigmoid(inputs.astype(jnp.float32)).reshape(-1)
    t = targets.astype(jnp.float32).reshape(-1)
    inter = jnp.sum(p * t)
    dice = 1.0 - (2.0 * inter + smooth) / (jnp.sum(p) + jnp.sum(t) + smooth)
    bce = jnp.mean(-(t * jnp.log(p) + (1.0 - t) * jnp.log1p(-p)))
    return bce + dice


if __name__ == "__main__":
    key = jax.random.PRNGKey(0)
    cases = [
        # (shape, dtype, kwargs)
        ((2, 4, 16, 16), jnp.float32, {}),              # aligned, fast path
        ((2, 3, 7, 11), jnp.float32, {}),               # unaligned -> masked tail
        ((1, 3, 40, 128), jnp.float32, {}),             # aligned single block
        ((1, 3, 40, 127), jnp.float32,                  # multi-block + chunked
         dict(max_block_rows=48, chunk_rows=16)),       #   inner loop + masked tail
        ((2, 4, 16, 16), jnp.bfloat16, {}),             # bf16 fast path
        ((2, 3, 7, 11), jnp.bfloat16, {}),              # bf16 masked tail
    ]
    for idx, (shape, dtype, kwargs) in enumerate(cases):
        k1, k2 = jax.random.split(jax.random.fold_in(key, idx))
        inputs = jax.random.normal(k1, shape, dtype=jnp.float32).astype(dtype)
        targets = (jax.random.uniform(k2, shape) > 0.5).astype(dtype)
        loss = jax.block_until_ready(
            dice_bce_loss(inputs, targets, smooth=1.0, **kwargs))
        ref = jax.block_until_ready(_reference(inputs, targets, smooth=1.0))
        assert jnp.allclose(loss, ref, atol=2e-5, rtol=2e-5), (
            shape, dtype, loss, ref)
    print("KERNEL_OK")
</pallas_src>

<mosaic_0001>
module attributes {stable_mosaic.version = 11 : i64} {
  func.func @_dice_bce_kernel(%arg0: i32, %arg1: memref<16x128xf32, #tpu.memory_space<vmem>>, %arg2: memref<16x128xf32, #tpu.memory_space<vmem>>, %arg3: memref<4x8x128xf32, #tpu.memory_space<vmem>>) attributes {dimension_semantics = [#tpu.dimension_semantics<arbitrary>], iteration_bounds = array<i64: 1>, scalar_prefetch = 0 : i64, scratch_operands = 0 : i64, tpu.core_type = #tpu.core_type<tc>, window_params = [{transform_indices = @transform_0, window_bounds = array<i64: 16, 128>}, {transform_indices = @transform_1, window_bounds = array<i64: 16, 128>}, {pipeline_mode = #tpu.pipeline_mode<synchronous>, transform_indices = @transform_2, window_bounds = array<i64: 4, 8, 128>}]} {
    %c0_i32 = arith.constant 0 : i32
    %0 = arith.cmpi eq, %arg0, %c0_i32 : i32
    %1 = arith.extui %0 : i1 to i32
    %c0_i32_0 = arith.constant 0 : i32
    %2 = arith.cmpi ne, %1, %c0_i32_0 : i32
    scf.if %2 {
      %cst_30 = arith.constant 0.000000e+00 : f32
      %50 = vector.broadcast %cst_30 : f32 to vector<4x8x128xf32>
      %c0_31 = arith.constant 0 : index
      %c0_32 = arith.constant 0 : index
      %c0_33 = arith.constant 0 : index
      %51 = vector.load %arg3[%c0_31, %c0_32, %c0_33] : memref<4x8x128xf32, #tpu.memory_space<vmem>>, vector<4x8x128xf32>
      tpu.vector_store %arg3[%c0_31, %c0_32, %c0_33], %50 {strides = array<i32>} : memref<4x8x128xf32, #tpu.memory_space<vmem>>, vector<4x8x128xf32>,
    } else {
    }
    %c0 = arith.constant 0 : index
    %c0_1 = arith.constant 0 : index
    %3 = vector.load %arg1[%c0, %c0_1] : memref<16x128xf32, #tpu.memory_space<vmem>>, vector<16x128xf32>
    %c0_2 = arith.constant 0 : index
    %c0_3 = arith.constant 0 : index
    %4 = vector.load %arg2[%c0_2, %c0_3] : memref<16x128xf32, #tpu.memory_space<vmem>>, vector<16x128xf32>
    %5 = math.absf %3 : vector<16x128xf32>
    %cst = arith.constant 0.000000e+00 : f32
    %6 = vector.broadcast %cst : f32 to vector<16x128xf32>
    %7 = arith.subf %6, %5 : vector<16x128xf32>
    %8 = math.exp %7 : vector<16x128xf32>
    %cst_4 = arith.constant 0.000000e+00 : f32
    %9 = vector.broadcast %cst_4 : f32 to vector<16x128xf32>
    %10 = arith.maximumf %3, %9 : vector<16x128xf32>
    %11 = math.log1p %8 : vector<16x128xf32>
    %12 = arith.addf %10, %11 : vector<16x128xf32>
    %13 = arith.subf %3, %12 : vector<16x128xf32>
    %14 = math.exp %13 : vector<16x128xf32>
    %15 = arith.mulf %4, %3 : vector<16x128xf32>
    %16 = arith.subf %12, %15 : vector<16x128xf32>
    %c0_5 = arith.constant 0 : index
    %c0_6 = arith.constant 0 : index
    %c0_7 = arith.constant 0 : index
    %17 = vector.load %arg3[%c0_5, %c0_6, %c0_7] : memref<4x8x128xf32, #tpu.memory_space<vmem>>, vector<1x8x128xf32>
    %18 = vector.shape_cast %17 : vector<1x8x128xf32> to vector<8x128xf32>
    %19 = arith.mulf %14, %4 : vector<16x128xf32>
    %20 = vector.shape_cast %19 : vector<16x128xf32> to vector<2x8x128xf32>
    %cst_8 = arith.constant dense<0.000000e+00> : vector<8x128xf32>
    %21 = vector.multi_reduction <add>, %20, %cst_8 [0] : vector<2x8x128xf32> to vector<8x128xf32>
    %22 = arith.addf %18, %21 : vector<8x128xf32>
    %c0_9 = arith.constant 0 : index
    %c0_10 = arith.constant 0 : index
    %c0_11 = arith.constant 0 : index
    %23 = vector.load %arg3[%c0_9, %c0_10, %c0_11] : memref<4x8x128xf32, #tpu.memory_space<vmem>>, vector<1x8x128xf32>
    %24 = vector.shape_cast %23 : vector<1x8x128xf32> to vector<8x128xf32>
    %25 = vector.shape_cast %22 : vector<8x128xf32> to vector<1x8x128xf32>
    tpu.vector_store %arg3[%c0_9, %c0_10, %c0_11], %25 {strides = array<i32>} : memref<4x8x128xf32, #tpu.memory_space<vmem>>, vector<1x8x128xf32>,
    %c1 = arith.constant 1 : index
    %c0_12 = arith.constant 0 : index
    %c0_13 = arith.constant 0 : index
    %26 = vector.load %arg3[%c1, %c0_12, %c0_13] : memref<4x8x128xf32, #tpu.memory_space<vmem>>, vector<1x8x128xf32>
    %27 = vector.shape_cast %26 : vector<1x8x128xf32> to vector<8x128xf32>
    %28 = vector.shape_cast %14 : vector<16x128xf32> to vector<2x8x128xf32>
    %cst_14 = arith.constant dense<0.000000e+00> : vector<8x128xf32>
    %29 = vector.multi_reduction <add>, %28, %cst_14 [0] : vector<2x8x128xf32> to vector<8x128xf32>
    %30 = arith.addf %27, %29 : vector<8x128xf32>
    %c1_15 = arith.constant 1 : index
    %c0_16 = arith.constant 0 : index
    %c0_17 = arith.constant 0 : index
    %31 = vector.load %arg3[%c1_15, %c0_16, %c0_17] : memref<4x8x128xf32, #tpu.memory_space<vmem>>, vector<1x8x128xf32>
    %32 = vector.shape_cast %31 : vector<1x8x128xf32> to vector<8x128xf32>
    %33 = vector.shape_cast %30 : vector<8x128xf32> to vector<1x8x128xf32>
    tpu.vector_store %arg3[%c1_15, %c0_16, %c0_17], %33 {strides = array<i32>} : memref<4x8x128xf32, #tpu.memory_space<vmem>>, vector<1x8x128xf32>,
    %c2 = arith.constant 2 : index
    %c0_18 = arith.constant 0 : index
    %c0_19 = arith.constant 0 : index
    %34 = vector.load %arg3[%c2, %c0_18, %c0_19] : memref<4x8x128xf32, #tpu.memory_space<vmem>>, vector<1x8x128xf32>
    %35 = vector.shape_cast %34 : vector<1x8x128xf32> to vector<8x128xf32>
    %36 = vector.shape_cast %4 : vector<16x128xf32> to vector<2x8x128xf32>
    %cst_20 = arith.constant dense<0.000000e+00> : vector<8x128xf32>
    %37 = vector.multi_reduction <add>, %36, %cst_20 [0] : vector<2x8x128xf32> to vector<8x128xf32>
    %38 = arith.addf %35, %37 : vector<8x128xf32>
    %c2_21 = arith.constant 2 : index
    %c0_22 = arith.constant 0 : index
    %c0_23 = arith.constant 0 : index
    %39 = vector.load %arg3[%c2_21, %c0_22, %c0_23] : memref<4x8x128xf32, #tpu.memory_space<vmem>>, vector<1x8x128xf32>
    %40 = vector.shape_cast %39 : vector<1x8x128xf32> to vector<8x128xf32>
    %41 = vector.shape_cast %38 : vector<8x128xf32> to vector<1x8x128xf32>
    tpu.vector_store %arg3[%c2_21, %c0_22, %c0_23], %41 {strides = array<i32>} : memref<4x8x128xf32, #tpu.memory_space<vmem>>, vector<1x8x128xf32>,
    %c3 = arith.constant 3 : index
    %c0_24 = arith.constant 0 : index
    %c0_25 = arith.constant 0 : index
    %42 = vector.load %arg3[%c3, %c0_24, %c0_25] : memref<4x8x128xf32, #tpu.memory_space<vmem>>, vector<1x8x128xf32>
    %43 = vector.shape_cast %42 : vector<1x8x128xf32> to vector<8x128xf32>
    %44 = vector.shape_cast %16 : vector<16x128xf32> to vector<2x8x128xf32>
    %cst_26 = arith.constant dense<0.000000e+00> : vector<8x128xf32>
    %45 = vector.multi_reduction <add>, %44, %cst_26 [0] : vector<2x8x128xf32> to vector<8x128xf32>
    %46 = arith.addf %43, %45 : vector<8x128xf32>
    %c3_27 = arith.constant 3 : index
    %c0_28 = arith.constant 0 : index
    %c0_29 = arith.constant 0 : index
    %47 = vector.load %arg3[%c3_27, %c0_28, %c0_29] : memref<4x8x128xf32, #tpu.memory_space<vmem>>, vector<1x8x128xf32>
    %48 = vector.shape_cast %47 : vector<1x8x128xf32> to vector<8x128xf32>
    %49 = vector.shape_cast %46 : vector<8x128xf32> to vector<1x8x128xf32>
    tpu.vector_store %arg3[%c3_27, %c0_28, %c0_29], %49 {strides = array<i32>} : memref<4x8x128xf32, #tpu.memory_space<vmem>>, vector<1x8x128xf32>,
    return
  }
  func.func @transform_0(%arg0: i32) -> (i32, i32) {
    %c0_i32 = arith.constant 0 : i32
    %c0_i32_0 = arith.constant 0 : i32
    return %arg0, %c0_i32 : i32, i32
  }
  func.func @transform_1(%arg0: i32) -> (i32, i32) {
    %c0_i32 = arith.constant 0 : i32
    %c0_i32_0 = arith.constant 0 : i32
    return %arg0, %c0_i32 : i32, i32
  }
  func.func @transform_2(%arg0: i32) -> (i32, i32, i32) {
    %c0_i32 = arith.constant 0 : i32
    %c0_i32_0 = arith.constant 0 : i32
    %c0_i32_1 = arith.constant 0 : i32
    %c0_i32_2 = arith.constant 0 : i32
    return %c0_i32, %c0_i32_0, %c0_i32_1 : i32, i32, i32
  }
}

</mosaic_0001>

<llo_original>
// kernel: tpu_custom_call.1
$region0: #{tpu_custom_call.1}
  #allocation0 [shape = 'u32[]', space=smem, size = 0x4, offset = 0x4, fixed_abs, tag = 'smem constant byte address 0x4 - core index']
  #allocation1 [shape = 'u32[72,128]{1,0:T(1,128)}', space=vmem, size = 0x9000, scoped, tag = 'internal scratch']
  %s0 = inlined_call_operand.hbm [shape: f32[16,128], index: 0, kind: input, shape index: {}]
  %s1 = inlined_call_operand.hbm [shape: f32[16,128], index: 1, kind: input, shape index: {}]
  %s2 = inlined_call_operand.hbm [shape: f32[4,8,128], index: 2, kind: output, shape index: {}]
  %s3 = sld [smem:[#allocation0]]
  $region30: #{tpu_custom_call.1} parent=0
    _
  %s5 = ssub.s32 1, %s3
  %s6 = scalar_select 0, %s5, %s3
  $region1: #{tpu_custom_call.1} parent=0
    #allocation2 [shape = 'u8[8192]{0}', space=vmem, size = 0x2000, scoped, tag = 'input window, operand 0, single buffered']
    #allocation3 [shape = 's32[1]{0}', space=sflag, size = 0x4, scoped, tag = 'scoped memory for tpu_custom_call.1']
    #allocation4 [shape = 's32[1]{0}', space=sflag, size = 0x4, scoped, tag = 'scoped memory for tpu_custom_call.1']
    #allocation5 [shape = 'u8[8192]{0}', space=vmem, size = 0x2000, scoped, tag = 'input window, operand 1, single buffered']
    #allocation6 [shape = 's32[1]{0}', space=sflag, size = 0x4, scoped, tag = 'scoped memory for tpu_custom_call.1']
    #allocation7 [shape = 'u8[16384]{0}', space=vmem, size = 0x4000, scoped, tag = 'output window, operand 0, single buffered']
    %7 = vsyncpa [#allocation3], 0
    %8 = vsyncpa [#allocation6], 0
    %9 = vsyncpa [#allocation4], 0
    // Predicated region
    $region2: #{tpu_custom_call.1} parent=1 // pred_check
      _
    $region3: #{tpu_custom_call.1} parent=1 // pred_check_branch
      %11 = sbr.rel (0) target = $region5
    $region4: #{tpu_custom_call.1} parent=1 // pred_region
      %13 = vsyncadd [#allocation3], 0
      %s14 = sshll.u32 %s0, 4
      %s15 = int_to_ptr.hbm [resolvable:$true] %s14
      %s16 = sshll.u32 [#allocation2], 4
      %s17 = int_to_ptr.vmem [resolvable:$true] %s16
      %22 = dma.hbm_to_vmem [thread:$0]  %s15, 256, %s17, [#allocation3], 128, 128, 8
    $region5: #{tpu_custom_call.1} parent=1 // pred_fallthru
      _
    // Predicated region
    $region6: #{tpu_custom_call.1} parent=1 // pred_check
      _
    $region7: #{tpu_custom_call.1} parent=1 // pred_check_branch
      %24 = sbr.rel (0) target = $region9
    $region8: #{tpu_custom_call.1} parent=1 // pred_region
      %26 = vsyncadd [#allocation6], 0
      %s27 = sshll.u32 %s1, 4
      %s28 = int_to_ptr.hbm [resolvable:$true] %s27
      %s29 = sshll.u32 [#allocation5], 4
      %s30 = int_to_ptr.vmem [resolvable:$true] %s29
      %35 = dma.hbm_to_vmem [thread:$0]  %s28, 256, %s30, [#allocation6], 128, 128, 8
    $region9: #{tpu_custom_call.1} parent=1 // pred_fallthru
      _
    // Predicated region
    $region10: #{tpu_custom_call.1} parent=1 // pred_check
      _
    $region11: #{tpu_custom_call.1} parent=1 // pred_check_branch
      %37 = sbr.rel (0) target = $region13
    $region12: #{tpu_custom_call.1} parent=1 // pred_region
      %39 = dma.done [#allocation3], 256
    $region13: #{tpu_custom_call.1} parent=1 // pred_fallthru
      _
    // Predicated region
    $region14: #{tpu_custom_call.1} parent=1 // pred_check
      _
    $region15: #{tpu_custom_call.1} parent=1 // pred_check_branch
      %41 = sbr.rel (0) target = $region17
    $region16: #{tpu_custom_call.1} parent=1 // pred_region
      %43 = dma.done [#allocation6], 256
    $region17: #{tpu_custom_call.1} parent=1 // pred_fallthru
      _
    %p44 = scmp.eq.s32.totalorder 0, 0
    // Predicated region
    $region18: #{tpu_custom_call.1} parent=1 // pred_check
      %p45 = pneg %p44
    $region19: #{tpu_custom_call.1} parent=1 // pred_check_branch
      %47 = sbr.rel (%p45) target = $region21
    $region20: #{tpu_custom_call.1} parent=1 // pred_region
      %48 = vst [vmem:[#allocation7] sm:$0xff] 0.0
      %49 = vst [vmem:[#allocation7 + $0x8] sm:$0xff] 0.0
      %50 = vst [vmem:[#allocation7 + $0x10] sm:$0xff] 0.0
      %51 = vst [vmem:[#allocation7 + $0x18] sm:$0xff] 0.0
    $region21: #{tpu_custom_call.1} parent=1 // pred_fallthru
      _
    %v52 = vld [vmem:[#allocation2] sm:$0xff]
    %v53 = vld [vmem:[#allocation2 + $0x8] sm:$0xff]
    %v54 = vld [vmem:[#allocation5] sm:$0xff]
    %v55 = vld [vmem:[#allocation5 + $0x8] sm:$0xff]
    %v56 = vand.u32 2147483647, %v52
    %v57 = vand.u32 2147483647, %v53
    %v58 = vsub.f32 0.0, %v56
    %v59 = vsub.f32 0.0, %v57
    %v60 = vmul.f32 %v58, 1.442695
    %v61 = vpow.pop %v60
    %v62 = vmul.f32 %v59, 1.442695
    %v63 = vpow.pop %v62
    %v64 = vmax.f32 %v52, 0.0
    %v65 = vmax.f32 %v53, 0.0
    %v66 = vadd.f32 %v61, 1.0
    %v67 = vlog2.pop %v66
    %v68 = vmul.f32 %v67, 0.6931472
    %v69 = vmul.f32 -0.5, %v61
    %v70 = vadd.f32 %v69, 1.0
    %v71 = vmul.f32 %v70, %v61
    %v72 = vand.u32 2147483647, %v61
    %vm73 = vcmp.lt.f32.partialorder %v72, 0.0004427343
    %v74 = vsel %vm73, %v71, %v68
    %v75 = vadd.f32 %v63, 1.0
    %v76 = vlog2.pop %v75
    %v77 = vmul.f32 %v76, 0.6931472
    %v78 = vmul.f32 -0.5, %v63
    %v79 = vadd.f32 %v78, 1.0
    %v80 = vmul.f32 %v79, %v63
    %v81 = vand.u32 2147483647, %v63
    %vm82 = vcmp.lt.f32.partialorder %v81, 0.0004427343
    %v83 = vsel %vm82, %v80, %v77
    %v84 = vadd.f32 %v64, %v74
    %v85 = vadd.f32 %v65, %v83
    %v86 = vsub.f32 %v52, %v84
    %v87 = vsub.f32 %v53, %v85
    %v88 = vmul.f32 %v86, 1.442695
    %v89 = vpow.pop %v88
    %v90 = vmul.f32 %v87, 1.442695
    %v91 = vpow.pop %v90
    %v92 = vmul.f32 %v54, %v52
    %v93 = vmul.f32 %v55, %v53
    %v94 = vsub.f32 %v84, %v92
    %v95 = vsub.f32 %v85, %v93
    %v96 = vld [vmem:[#allocation7] sm:$0xff]
    %v97 = vmul.f32 %v89, %v54
    %v98 = vmul.f32 %v91, %v55
    %v99 = vadd.f32 %v97, %v98
    %v100 = vadd.f32 %v96, %v99
    %101 = vst [vmem:[#allocation7] sm:$0xff] %v100
    %s102 = scalar_lea.vmem [#allocation7], 8
    %v103 = vld [vmem:[%s102] sm:$0xff]
    %v104 = vadd.f32 %v89, %v91
    %v105 = vadd.f32 %v103, %v104
    %106 = vst [vmem:[%s102] sm:$0xff] %v105
    %s107 = scalar_lea.vmem [#allocation7], 16
    %v108 = vld [vmem:[%s107] sm:$0xff]
    %v109 = vadd.f32 %v54, %v55
    %v110 = vadd.f32 %v108, %v109
    %111 = vst [vmem:[%s107] sm:$0xff] %v110
    %s112 = scalar_lea.vmem [#allocation7], 24
    %v113 = vld [vmem:[%s112] sm:$0xff]
    %v114 = vadd.f32 %v94, %v95
    %v115 = vadd.f32 %v113, %v114
    %116 = vst [vmem:[%s112] sm:$0xff] %v115
    // Predicated region
    $region22: #{tpu_custom_call.1} parent=1 // pred_check
      _
    $region23: #{tpu_custom_call.1} parent=1 // pred_check_branch
      %118 = sbr.rel (0) target = $region25
    $region24: #{tpu_custom_call.1} parent=1 // pred_region
      %120 = vsyncadd [#allocation4], 0
      %s121 = sshll.u32 [#allocation7], 4
      %s122 = int_to_ptr.vmem [resolvable:$true] %s121
      %s123 = sshll.u32 %s2, 4
      %s124 = int_to_ptr.hbm [resolvable:$true] %s123
      %129 = dma.vmem_to_hbm [thread:$0]  %s122, 512, %s124, [#allocation4], 128, 128, 8
    $region25: #{tpu_custom_call.1} parent=1 // pred_fallthru
      _
    // Predicated region
    $region26: #{tpu_custom_call.1} parent=1 // pred_check
      _
    $region27: #{tpu_custom_call.1} parent=1 // pred_check_branch
      %131 = sbr.rel (0) target = $region29
    $region28: #{tpu_custom_call.1} parent=1 // pred_region
      %133 = dma.done [#allocation4], 512
    $region29: #{tpu_custom_call.1} parent=1 // pred_fallthru
      _
    %134 = vsyncpa [#allocation3], 1
    %135 = vsyncpa [#allocation6], 1
    %136 = vsyncpa [#allocation4], 1

</llo_original>
